<compile_context>
chip_gen: v5e
topology: v5e:2x2
jax: 0.10.0
libtpu: 0.0.40
codegen_flags: <defaults>
</compile_context>

<pallas_src>
import functools

import jax
import jax.numpy as jnp
from jax.experimental import pallas as pl
from jax.experimental.pallas import tpu as pltpu

LANE = 128


def _round_up(n, m):
    return ((n + m - 1) // m) * m


def _vmem_block_bytes(rows, cols, dtype):
    """Bytes one block occupies in VMEM (sublane/lane padded)."""
    sub = 16 if jnp.dtype(dtype) == jnp.bfloat16 else 8
    return _round_up(rows, sub) * _round_up(cols, LANE) * jnp.dtype(dtype).itemsize


def _param_spec(shape, single_buffer):
    """Full-extent, grid-invariant block (weights / biases)."""
    index_map = lambda i: (0,) * len(shape)
    if single_buffer:
        # Invariant blocks don't need a second pipeline buffer; halves their
        # VMEM residency (matters for large layers on v7x's 64 MiB VMEM).
        return pl.BlockSpec(shape, index_map, pipeline_mode=pl.Buffered(1))
    return pl.BlockSpec(shape, index_map)


def mlp_kernel(x_ref, w1_ref, b1_ref, w2_ref, b2_ref, o_ref):
    # Layer 1: x @ W1 + b1, ReLU.  f32 accumulation on the MXU.
    h = jnp.dot(x_ref[...], w1_ref[...], preferred_element_type=jnp.float32)
    h = jnp.maximum(h + b1_ref[...], 0.0)          # (TB, hid) + (1, hid)
    # Layer 2: h @ W2 + b2, ReLU.
    o = jnp.dot(h.astype(w2_ref.dtype), w2_ref[...],
                preferred_element_type=jnp.float32)
    o = jnp.maximum(o + b2_ref[...], 0.0)          # (TB, out) + (1, out)
    o_ref[...] = o.astype(o_ref.dtype)


def prepare_params(w1, b1, w2, b2, *, use_bf16=True):
    """One-time parameter prep (call OUTSIDE the per-step forward).

    Weights are stored (in_features, out_features) -- the transpose of PyTorch
    nn.Linear storage -- so the kernel computes x @ W + b.  bf16 storage halves
    the streamed parameter/activation bytes on this HBM-bound kernel; the MXU
    still accumulates in f32.
    """
    w_dtype = jnp.bfloat16 if use_bf16 else jnp.float32
    return (w1.astype(w_dtype),
            b1.astype(jnp.float32).reshape(1, -1),
            w2.astype(w_dtype),
            b2.astype(jnp.float32).reshape(1, -1))


@functools.partial(jax.jit, static_argnames=("tb", "single_buffer_params"))
def simple_net_forward(x, w1, b1, w2, b2, *, tb=1024, single_buffer_params=False):
    """Equivalent of SimpleNet.forward.

    x may have any leading shape; it is flattened to (-1, in_sz), exactly like
    x.view(-1, in_sz).  Pass parameters from prepare_params (biases as (1, d);
    weights optionally already bf16 so no per-call cast of call-invariant data).
    """
    in_sz, hid = w1.shape
    out_sz = w2.shape[1]

    # Per-call cast of x only (cheap, and in real pipelines it fuses with the
    # producer of x); parameters were cast once in prepare_params.
    x2d = x.reshape(-1, in_sz).astype(w1.dtype)
    B = x2d.shape[0]

    # ---- batch tile: sublane-packed rows, >= 2 grid steps when B allows -----
    row_align = 16 if x2d.dtype == jnp.bfloat16 else 8   # bf16 packs 16 rows/vreg tile
    half_b = _round_up(max((B + 1) // 2, row_align), row_align)
    TB = max(row_align, min(tb, half_b, _round_up(B, row_align)))
    grid = (pl.cdiv(B, TB),)

    # ---- VMEM budget: 2x(x slab + out slab) + 2x params, with headroom ------
    vmem_need = (
        2 * (_vmem_block_bytes(TB, in_sz, x2d.dtype)
             + _vmem_block_bytes(TB, out_sz, jnp.float32))
        + 2 * (_vmem_block_bytes(in_sz, hid, w1.dtype)
               + _vmem_block_bytes(1, hid, jnp.float32)
               + _vmem_block_bytes(hid, out_sz, w2.dtype)
               + _vmem_block_bytes(1, out_sz, jnp.float32)))
    vmem_limit = int(min(60 * 2**20, max(32 * 2**20, int(1.25 * vmem_need))))

    # ---- cost estimate: actual streamed bytes (x once, params once, out once)
    itemsize_x = jnp.dtype(x2d.dtype).itemsize
    itemsize_w = jnp.dtype(w1.dtype).itemsize
    cost = pl.CostEstimate(
        flops=2 * B * (in_sz * hid + hid * out_sz),
        transcendentals=0,
        bytes_accessed=(x2d.size * itemsize_x
                        + (w1.size + w2.size) * itemsize_w
                        + (b1.size + b2.size) * 4
                        + B * out_sz * 4),
    )

    return pl.pallas_call(
        mlp_kernel,
        out_shape=jax.ShapeDtypeStruct((B, out_sz), jnp.float32),
        grid=grid,
        in_specs=[
            # activations: batch-tiled, auto double-buffered (prefetch i+1
            # while computing i); full (unpadded) feature extent.
            pl.BlockSpec((TB, in_sz), lambda i: (i, 0)),
            # weights / biases: constant block index -> DMA'd once, VMEM-resident.
            _param_spec((in_sz, hid), single_buffer_params),
            _param_spec((1, hid), single_buffer_params),
            _param_spec((hid, out_sz), single_buffer_params),
            _param_spec((1, out_sz), single_buffer_params),
        ],
        out_specs=pl.BlockSpec((TB, out_sz), lambda i: (i, 0)),
        compiler_params=pltpu.CompilerParams(
            dimension_semantics=("parallel",),
            vmem_limit_bytes=vmem_limit),
        cost_estimate=cost,
    )(x2d, w1, b1, w2, b2)


def init_params(key, in_sz, hid, out_sz):
    """Deterministic init mimicking nn.Linear default (uniform +/- 1/sqrt(fan_in))."""
    k1, k2, k3, k4 = jax.random.split(key, 4)
    lim1 = 1.0 / jnp.sqrt(in_sz)
    lim2 = 1.0 / jnp.sqrt(hid)
    w1 = jax.random.uniform(k1, (in_sz, hid), jnp.float32, -lim1, lim1)
    b1 = jax.random.uniform(k2, (hid,), jnp.float32, -lim1, lim1)
    w2 = jax.random.uniform(k3, (hid, out_sz), jnp.float32, -lim2, lim2)
    b2 = jax.random.uniform(k4, (out_sz,), jnp.float32, -lim2, lim2)
    return w1, b1, w2, b2


if __name__ == "__main__":
    in_sz, hid, out_sz = 16, 32, 8
    key = jax.random.PRNGKey(0)
    kx, kp = jax.random.split(key)

    # Leading dims get flattened to (-1, in_sz), just like x.view(-1, in_sz).
    x = jax.random.normal(kx, (4, 8, in_sz), dtype=jnp.float32)
    w1, b1, w2, b2 = init_params(kp, in_sz, hid, out_sz)

    # Pure-JAX reference.
    ref = jnp.maximum(
        jnp.maximum(x.reshape(-1, in_sz) @ w1 + b1, 0.0) @ w2 + b2, 0.0)

    # 1) Exact f32 storage path.
    p_f32 = prepare_params(w1, b1, w2, b2, use_bf16=False)
    out_f32 = simple_net_forward(x, *p_f32)
    jax.block_until_ready(out_f32)
    assert out_f32.shape == ref.shape, "shape mismatch vs reference"
    assert jnp.allclose(out_f32, ref, atol=1e-4), "f32 kernel mismatch vs reference"

    # 2) Recommended bf16-storage path (halves streamed bytes; f32 accumulation).
    p_bf16 = prepare_params(w1, b1, w2, b2, use_bf16=True)
    out_bf16 = simple_net_forward(x, *p_bf16)
    jax.block_until_ready(out_bf16)
    assert out_bf16.shape == ref.shape, "shape mismatch vs reference (bf16)"
    assert jnp.allclose(out_bf16, ref, atol=5e-2, rtol=5e-2), \
        "bf16 kernel mismatch vs reference"

    # TODO(synk): SimpleNet.load/save (torch state_dict file I/O) is host-side
    # and has no kernel equivalent.
    print("KERNEL_OK")
</pallas_src>

<mosaic_0001>
module attributes {stable_mosaic.version = 11 : i64} {
  func.func @mlp_kernel(%arg0: i32, %arg1: memref<16x16xf32, #tpu.memory_space<vmem>>, %arg2: memref<16x32xf32, #tpu.memory_space<vmem>>, %arg3: memref<1x32xf32, #tpu.memory_space<vmem>>, %arg4: memref<32x8xf32, #tpu.memory_space<vmem>>, %arg5: memref<1x8xf32, #tpu.memory_space<vmem>>, %arg6: memref<16x8xf32, #tpu.memory_space<vmem>>) attributes {dimension_semantics = [#tpu.dimension_semantics<parallel>], iteration_bounds = array<i64: 2>, scalar_prefetch = 0 : i64, scratch_operands = 0 : i64, tpu.core_type = #tpu.core_type<tc>, window_params = [{transform_indices = @transform_0, window_bounds = array<i64: 16, 16>}, {pipeline_mode = #tpu.pipeline_mode<synchronous>, transform_indices = @transform_1, window_bounds = array<i64: 16, 32>}, {pipeline_mode = #tpu.pipeline_mode<synchronous>, transform_indices = @transform_2, window_bounds = array<i64: 1, 32>}, {pipeline_mode = #tpu.pipeline_mode<synchronous>, transform_indices = @transform_3, window_bounds = array<i64: 32, 8>}, {pipeline_mode = #tpu.pipeline_mode<synchronous>, transform_indices = @transform_4, window_bounds = array<i64: 1, 8>}, {transform_indices = @transform_5, window_bounds = array<i64: 16, 8>}]} {
    %c0 = arith.constant 0 : index
    %c0_0 = arith.constant 0 : index
    %0 = vector.load %arg1[%c0, %c0_0] : memref<16x16xf32, #tpu.memory_space<vmem>>, vector<16x16xf32>
    %c0_1 = arith.constant 0 : index
    %c0_2 = arith.constant 0 : index
    %1 = vector.load %arg2[%c0_1, %c0_2] : memref<16x32xf32, #tpu.memory_space<vmem>>, vector<16x32xf32>
    %cst = arith.constant dense<0.000000e+00> : vector<16x32xf32>
    %2 = tpu.matmul %0, %1, %cst {dimension_numbers = #tpu.dot_dimension_numbers<[1], [0], [0], [1], [0, 0, 1, 1], [], []>} : vector<16x16xf32>, vector<16x32xf32>, vector<16x32xf32> -> vector<16x32xf32>
    %c0_3 = arith.constant 0 : index
    %c0_4 = arith.constant 0 : index
    %3 = vector.load %arg3[%c0_3, %c0_4] : memref<1x32xf32, #tpu.memory_space<vmem>>, vector<1x32xf32>
    %4 = vector.broadcast %3 : vector<1x32xf32> to vector<16x32xf32>
    %5 = arith.addf %2, %4 : vector<16x32xf32>
    %cst_5 = arith.constant 0.000000e+00 : f32
    %6 = vector.broadcast %cst_5 : f32 to vector<16x32xf32>
    %7 = arith.maximumf %5, %6 : vector<16x32xf32>
    %c0_6 = arith.constant 0 : index
    %c0_7 = arith.constant 0 : index
    %8 = vector.load %arg4[%c0_6, %c0_7] : memref<32x8xf32, #tpu.memory_space<vmem>>, vector<32x8xf32>
    %cst_8 = arith.constant dense<0.000000e+00> : vector<16x8xf32>
    %9 = tpu.matmul %7, %8, %cst_8 {dimension_numbers = #tpu.dot_dimension_numbers<[1], [0], [0], [1], [0, 0, 1, 1], [], []>} : vector<16x32xf32>, vector<32x8xf32>, vector<16x8xf32> -> vector<16x8xf32>
    %c0_9 = arith.constant 0 : index
    %c0_10 = arith.constant 0 : index
    %10 = vector.load %arg5[%c0_9, %c0_10] : memref<1x8xf32, #tpu.memory_space<vmem>>, vector<1x8xf32>
    %11 = vector.broadcast %10 : vector<1x8xf32> to vector<16x8xf32>
    %12 = arith.addf %9, %11 : vector<16x8xf32>
    %cst_11 = arith.constant 0.000000e+00 : f32
    %13 = vector.broadcast %cst_11 : f32 to vector<16x8xf32>
    %14 = arith.maximumf %12, %13 : vector<16x8xf32>
    %c0_12 = arith.constant 0 : index
    %c0_13 = arith.constant 0 : index
    %15 = vector.load %arg6[%c0_12, %c0_13] : memref<16x8xf32, #tpu.memory_space<vmem>>, vector<16x8xf32>
    tpu.vector_store %arg6[%c0_12, %c0_13], %14 {strides = array<i32>} : memref<16x8xf32, #tpu.memory_space<vmem>>, vector<16x8xf32>,
    return
  }
  func.func @transform_0(%arg0: i32) -> (i32, i32) {
    %c0_i32 = arith.constant 0 : i32
    %c0_i32_0 = arith.constant 0 : i32
    return %arg0, %c0_i32 : i32, i32
  }
  func.func @transform_1(%arg0: i32) -> (i32, i32) {
    %c0_i32 = arith.constant 0 : i32
    %c0_i32_0 = arith.constant 0 : i32
    %c0_i32_1 = arith.constant 0 : i32
    return %c0_i32, %c0_i32_0 : i32, i32
  }
  func.func @transform_2(%arg0: i32) -> (i32, i32) {
    %c0_i32 = arith.constant 0 : i32
    %c0_i32_0 = arith.constant 0 : i32
    %c0_i32_1 = arith.constant 0 : i32
    return %c0_i32, %c0_i32_0 : i32, i32
  }
  func.func @transform_3(%arg0: i32) -> (i32, i32) {
    %c0_i32 = arith.constant 0 : i32
    %c0_i32_0 = arith.constant 0 : i32
    %c0_i32_1 = arith.constant 0 : i32
    return %c0_i32, %c0_i32_0 : i32, i32
  }
  func.func @transform_4(%arg0: i32) -> (i32, i32) {
    %c0_i32 = arith.constant 0 : i32
    %c0_i32_0 = arith.constant 0 : i32
    %c0_i32_1 = arith.constant 0 : i32
    return %c0_i32, %c0_i32_0 : i32, i32
  }
  func.func @transform_5(%arg0: i32) -> (i32, i32) {
    %c0_i32 = arith.constant 0 : i32
    %c0_i32_0 = arith.constant 0 : i32
    return %arg0, %c0_i32 : i32, i32
  }
}

</mosaic_0001>

<llo_original>
// kernel: simple_net_forward.1
$region0: #{simple_net_forward.1}
  #allocation0 [shape = 'u32[]', space=smem, size = 0x4, offset = 0x4, fixed_abs, tag = 'smem constant byte address 0x4 - core index']
  #allocation1 [shape = 'u32[72,128]{1,0:T(1,128)}', space=vmem, size = 0x9000, scoped, tag = 'internal scratch']
  %s0 = inlined_call_operand.vmem [shape: f32[32,16], index: 0, kind: input, shape index: {}]
  %s1 = inlined_call_operand.hbm [shape: f32[16,32], index: 1, kind: input, shape index: {}]
  %s2 = inlined_call_operand.vmem [shape: f32[1,32], index: 2, kind: input, shape index: {}]
  %s3 = inlined_call_operand.vmem [shape: f32[32,8], index: 3, kind: input, shape index: {}]
  %s4 = inlined_call_operand.vmem [shape: f32[1,8], index: 4, kind: input, shape index: {}]
  %s5 = inlined_call_operand.vmem [shape: f32[32,8], index: 5, kind: output, shape index: {}]
  %s6 = sld [smem:[#allocation0]]
  $region57: #{simple_net_forward.1} parent=0
    _
  %s8 = ssub.s32 1, %s6
  %s9 = scalar_select 0, %s8, %s6
  $region1: #{simple_net_forward.1} parent=0
    #allocation2 [shape = 'u8[8192]{0}', space=vmem, size = 0x2000, scoped, tag = 'input window, operand 1, single buffered']
    #allocation3 [shape = 's32[2]{0}', space=sflag, size = 0x8, scoped, tag = 'scoped memory for simple_net_forward.1']
    %10 = vsyncpa [#allocation3], 0
    loop: start=0, step=1, limit=4
    $region2: #{simple_net_forward.1} parent=1 // loop_pre_header
      _
    $region3: #{simple_net_forward.1} parent=1 // loop_header
      %s12 = sphi 0, %s16
      %p13 = scmp.ge.s32.totalorder %s12, 4
      %s22 = sphi 0, %s24
      %s25 = sphi 0, %s22
      %s26 = sphi 0, %s25
      %s42 = sphi 0, %s26
      %s46 = sphi 0, %s46
      %s48 = sphi 0, %s46
      %s49 = sphi 0, %s48
      %s63 = sphi 0, %s49
      %s67 = sphi 0, %s67
      %s69 = sphi 0, %s67
      %s70 = sphi 0, %s69
      %s84 = sphi 0, %s70
      %s88 = sphi 0, %s88
      %s90 = sphi 0, %s88
      %s91 = sphi 0, %s90
      %s105 = sphi 0, %s91
      %s109 = sphi 0, %s109
      %s111 = sphi 0, %s109
      %s112 = sphi 0, %s111
      %s126 = sphi 0, %s112
      %s132 = sphi 0, %s134
      %s135 = sphi 0, %s132
      %s136 = sphi 0, %s135
      %s152 = sphi 0, %s136
    $region4: #{simple_net_forward.1} parent=1 // loop_header_branch
      %15 = sbr.rel (%p13) target = $region8
    $region5: #{simple_net_forward.1} parent=1 // loop_body
      %s17 = ssub.s32 %s12, 1
      %s18 = ssub.s32 %s12, 2
      %s19 = sadd.s32 %s12, 1
      %s20 = ssub.s32 %s12, %s19
      %p21 = scmp.eq.s32.totalorder %s20, 0
      %s23 = sadd.s32 %s22, 1
      %s24 = scalar_select %p21, %s22, %s23
      %p27 = pneg %p21
      %p28 = scmp.eq.s32.totalorder %s12, 1
      %p29 = por %p27, %p28
      %p30 = scmp.ne.s32.totalorder %s22, %s25
      %p31 = scmp.eq.s32.totalorder %s12, 0
      %p32 = por %p30, %p31
      %p33 = scmp.ne.s32.totalorder %s22, %s25
      %p34 = scmp.eq.s32.totalorder %s17, 1
      %p35 = por %p33, %p34
      %p36 = scmp.ne.s32.totalorder %s25, %s26
      %p37 = scmp.eq.s32.totalorder %s17, 0
      %p38 = por %p36, %p37
      %p39 = scmp.ne.s32.totalorder %s25, %s26
      %p40 = scmp.eq.s32.totalorder %s18, 1
      %p41 = por %p39, %p40
      %p43 = scmp.ne.s32.totalorder %s26, %s42
      %p44 = scmp.eq.s32.totalorder %s18, 0
      %p45 = por %p43, %p44
      %s47 = sadd.s32 %s46, 1
      %p50 = scmp.eq.s32.totalorder %s12, 1
      %p51 = scmp.ne.s32.totalorder %s46, %s48
      %p52 = scmp.eq.s32.totalorder %s12, 0
      %p53 = por %p51, %p52
      %p54 = scmp.ne.s32.totalorder %s46, %s48
      %p55 = scmp.eq.s32.totalorder %s17, 1
      %p56 = por %p54, %p55
      %p57 = scmp.ne.s32.totalorder %s48, %s49
      %p58 = scmp.eq.s32.totalorder %s17, 0
      %p59 = por %p57, %p58
      %p60 = scmp.ne.s32.totalorder %s48, %s49
      %p61 = scmp.eq.s32.totalorder %s18, 1
      %p62 = por %p60, %p61
      %p64 = scmp.ne.s32.totalorder %s49, %s63
      %p65 = scmp.eq.s32.totalorder %s18, 0
      %p66 = por %p64, %p65
      %s68 = sadd.s32 %s67, 1
      %p71 = scmp.eq.s32.totalorder %s12, 1
      %p72 = scmp.ne.s32.totalorder %s67, %s69
      %p73 = scmp.eq.s32.totalorder %s12, 0
      %p74 = por %p72, %p73
      %p75 = scmp.ne.s32.totalorder %s67, %s69
      %p76 = scmp.eq.s32.totalorder %s17, 1
      %p77 = por %p75, %p76
      %p78 = scmp.ne.s32.totalorder %s69, %s70
      %p79 = scmp.eq.s32.totalorder %s17, 0
      %p80 = por %p78, %p79
      %p81 = scmp.ne.s32.totalorder %s69, %s70
      %p82 = scmp.eq.s32.totalorder %s18, 1
      %p83 = por %p81, %p82
      %p85 = scmp.ne.s32.totalorder %s70, %s84
      %p86 = scmp.eq.s32.totalorder %s18, 0
      %p87 = por %p85, %p86
      %s89 = sadd.s32 %s88, 1
      %p92 = scmp.eq.s32.totalorder %s12, 1
      %p93 = scmp.ne.s32.totalorder %s88, %s90
      %p94 = scmp.eq.s32.totalorder %s12, 0
      %p95 = por %p93, %p94
      %p96 = scmp.ne.s32.totalorder %s88, %s90
      %p97 = scmp.eq.s32.totalorder %s17, 1
      %p98 = por %p96, %p97
      %p99 = scmp.ne.s32.totalorder %s90, %s91
      %p100 = scmp.eq.s32.totalorder %s17, 0
      %p101 = por %p99, %p100
      %p102 = scmp.ne.s32.totalorder %s90, %s91
      %p103 = scmp.eq.s32.totalorder %s18, 1
      %p104 = por %p102, %p103
      %p106 = scmp.ne.s32.totalorder %s91, %s105
      %p107 = scmp.eq.s32.totalorder %s18, 0
      %p108 = por %p106, %p107
      %s110 = sadd.s32 %s109, 1
      %p113 = scmp.eq.s32.totalorder %s12, 1
      %p114 = scmp.ne.s32.totalorder %s109, %s111
      %p115 = scmp.eq.s32.totalorder %s12, 0
      %p116 = por %p114, %p115
      %p117 = scmp.ne.s32.totalorder %s109, %s111
      %p118 = scmp.eq.s32.totalorder %s17, 1
      %p119 = por %p117, %p118
      %p120 = scmp.ne.s32.totalorder %s111, %s112
      %p121 = scmp.eq.s32.totalorder %s17, 0
      %p122 = por %p120, %p121
      %p123 = scmp.ne.s32.totalorder %s111, %s112
      %p124 = scmp.eq.s32.totalorder %s18, 1
      %p125 = por %p123, %p124
      %p127 = scmp.ne.s32.totalorder %s112, %s126
      %p128 = scmp.eq.s32.totalorder %s18, 0
      %p129 = por %p127, %p128
      %s130 = ssub.s32 %s12, %s19
      %p131 = scmp.eq.s32.totalorder %s130, 0
      %s133 = sadd.s32 %s132, 1
      %s134 = scalar_select %p131, %s132, %s133
      %p137 = pneg %p131
      %p138 = scmp.eq.s32.totalorder %s12, 1
      %p139 = por %p137, %p138
      %p140 = scmp.ne.s32.totalorder %s132, %s135
      %p141 = scmp.eq.s32.totalorder %s12, 0
      %p142 = por %p140, %p141
      %p143 = scmp.ne.s32.totalorder %s132, %s135
      %p144 = scmp.eq.s32.totalorder %s17, 1
      %p145 = por %p143, %p144
      %p146 = scmp.ne.s32.totalorder %s135, %s136
      %p147 = scmp.eq.s32.totalorder %s17, 0
      %p148 = por %p146, %p147
      %p149 = scmp.ne.s32.totalorder %s135, %s136
      %p150 = scmp.eq.s32.totalorder %s18, 1
      %p151 = por %p149, %p150
      %p153 = scmp.ne.s32.totalorder %s136, %s152
      %p154 = scmp.eq.s32.totalorder %s18, 0
      %p155 = por %p153, %p154
      %p156 = scmp.le.s32.totalorder 1, %s12
      %p157 = scmp.lt.s32.totalorder %s12, 3
      %p158 = pnand %p156, %p157
      %p159 = pneg %p158
      // Predicated region
      $region9: #{simple_net_forward.1} parent=5 // pred_check
        _
      $region10: #{simple_net_forward.1} parent=5 // pred_check_branch
        %161 = sbr.rel (%p158) target = $region12
      $region11: #{simple_net_forward.1} parent=5 // pred_region
        %s162 = ssub.s32 %s12, 1
        // Predicated region
        $region13: #{simple_net_forward.1} parent=11 // pred_check
          %p163 = pneg %p59
        $region14: #{simple_net_forward.1} parent=11 // pred_check_branch
          %165 = sbr.rel (%p163) target = $region16
        $region15: #{simple_net_forward.1} parent=11 // pred_region
          %167 = vsyncadd [#allocation3], 0
          %s168 = sshll.u32 %s1, 4
          %s169 = int_to_ptr.hbm [resolvable:$true] %s168
          %s170 = sshll.u32 [#allocation2], 4
          %s171 = int_to_ptr.vmem [resolvable:$true] %s170
          %176 = dma.hbm_to_vmem [thread:$0]  %s169, 256, %s171, [#allocation3], 128, 128, 8
        $region16: #{simple_net_forward.1} parent=11 // pred_fallthru
          _
        // Predicated region
        $region17: #{simple_net_forward.1} parent=11 // pred_check
          %p177 = pneg %p80
        $region18: #{simple_net_forward.1} parent=11 // pred_check_branch
          %179 = sbr.rel (%p177) target = $region20
        $region19: #{simple_net_forward.1} parent=11 // pred_region
          _
        $region20: #{simple_net_forward.1} parent=11 // pred_fallthru
          _
        // Predicated region
        $region21: #{simple_net_forward.1} parent=11 // pred_check
          %p180 = pneg %p101
        $region22: #{simple_net_forward.1} parent=11 // pred_check_branch
          %182 = sbr.rel (%p180) target = $region24
        $region23: #{simple_net_forward.1} parent=11 // pred_region
          _
        $region24: #{simple_net_forward.1} parent=11 // pred_fallthru
          _
        // Predicated region
        $region25: #{simple_net_forward.1} parent=11 // pred_check
          %p183 = pneg %p122
        $region26: #{simple_net_forward.1} parent=11 // pred_check_branch
          %185 = sbr.rel (%p183) target = $region28
        $region27: #{simple_net_forward.1} parent=11 // pred_region
          _
        $region28: #{simple_net_forward.1} parent=11 // pred_fallthru
          _
      $region12: #{simple_net_forward.1} parent=5 // pred_fallthru
        _
      %p186 = scmp.lt.s32.totalorder %s12, 2
      // Predicated region
      $region29: #{simple_net_forward.1} parent=5 // pred_check
        %p187 = pneg %p186
      $region30: #{simple_net_forward.1} parent=5 // pred_check_branch
        %189 = sbr.rel (%p187) target = $region32
      $region31: #{simple_net_forward.1} parent=5 // pred_region
        // Predicated region
        $region33: #{simple_net_forward.1} parent=31 // pred_check
          %p190 = pneg %p32
        $region34: #{simple_net_forward.1} parent=31 // pred_check_branch
          %192 = sbr.rel (%p190) target = $region36
        $region35: #{simple_net_forward.1} parent=31 // pred_region
          %s193 = smul.u32 2, %s12
          %p194 = scmp.lt.s32.totalorder %s193, 3
          %s195 = scalar_select %p194, %s193, 3
          %s196 = smul.addr %s195, 8
          %s197 = scalar_lea.vmem %s0, %s196
          %s198 = smul.u32 2, %s12
        $region36: #{simple_net_forward.1} parent=31 // pred_fallthru
          _
      $region32: #{simple_net_forward.1} parent=5 // pred_fallthru
        _
      %p199 = scmp.le.s32.totalorder 1, %s12
      %p200 = scmp.lt.s32.totalorder %s12, 3
      %p201 = pnand %p199, %p200
      %p202 = pneg %p201
      // Predicated region
      $region37: #{simple_net_forward.1} parent=5 // pred_check
        _
      $region38: #{simple_net_forward.1} parent=5 // pred_check_branch
        %204 = sbr.rel (%p201) target = $region40
      $region39: #{simple_net_forward.1} parent=5 // pred_region
        %s205 = ssub.s32 %s12, 1
        // Predicated region
        $region41: #{simple_net_forward.1} parent=39 // pred_check
          %p206 = pneg %p59
        $region42: #{simple_net_forward.1} parent=39 // pred_check_branch
          %208 = sbr.rel (%p206) target = $region44
        $region43: #{simple_net_forward.1} parent=39 // pred_region
          %210 = dma.done [#allocation3], 256
        $region44: #{simple_net_forward.1} parent=39 // pred_fallthru
          _
        %s211 = smul.u32 2, %s17
        %p212 = scmp.lt.s32.totalorder %s211, 3
        %s213 = scalar_select %p212, %s211, 3
        %s214 = smul.addr %s213, 8
        %s215 = scalar_lea.vmem %s0, %s214
        %p216 = pneg %p38
        %p217 = pneg %p35
        %p218 = pneg %p59
        %p219 = pneg %p56
        %p220 = pneg %p80
        %p221 = pneg %p77
        %p222 = pneg %p101
        %p223 = pneg %p98
        %p224 = pneg %p122
        %p225 = pneg %p119
        %p226 = pneg %p148
        %p227 = pneg %p145
        %s228 = smul.u32 2, %s17
        %p229 = scmp.lt.s32.totalorder %s228, 3
        %s230 = scalar_select %p229, %s228, 3
        %s231 = smul.addr %s230, 8
        %s232 = scalar_lea.vmem %s5, %s231
        %s233 = smul.u32 2, %s17
        %p234 = scmp.lt.s32.totalorder %s233, 3
        %s235 = scalar_select %p234, %s233, 3
        %s236 = smul.addr %s235, 8
        %s237 = scalar_lea.vmem %s0, %s236
        %s238 = smul.u32 2, %s17
        %s239 = smul.u32 2, %s17
        %p240 = scmp.lt.s32.totalorder %s239, 3
        %s241 = scalar_select %p240, %s239, 3
        %s242 = smul.addr %s241, 8
        %s243 = scalar_lea.vmem %s5, %s242
        %s244 = smul.u32 2, %s17
        %v245 = vld [vmem:[%s237] sm:$0xff]
        %v246 = vld [vmem:[%s237 + $0x8] sm:$0xff]
        %v247 = vld [vmem:[#allocation2] sm:$0xff]
        %v248 = vld [vmem:[#allocation2 + $0x8] sm:$0xff]
        %v249 = vld [vmem:[%s2] sm:$0x1]
        %v251 = vperm.slane %v249, 0
        %vm253 = vcmask 130048
        %v255 = vsel %vm253, %v245, 0
        %v258 = vsel %vm253, %v246, 0
        %260 = vmatpush.msra.mxu0 0.0
        %261 = vmatpush.msra.mxu0 0.0
        %262 = vmatpush.msra.mxu0 0.0
        %263 = vmatpush.msra.mxu0 0.0
        %264 = vmatpush.msra.mxu0 0.0
        %265 = vmatpush.msra.mxu0 0.0
        %266 = vmatpush.msra.mxu0 0.0
        %267 = vmatpush.msra.mxu0 0.0
        %268 = vmatpush.msra.mxu0 0.0
        %269 = vmatpush.msra.mxu0 0.0
        %270 = vmatpush.msra.mxu0 0.0
        %271 = vmatpush.msra.mxu0 0.0
        %272 = vmatpush.msra.mxu0 0.0
        %273 = vmatpush.msra.mxu0 0.0
        %274 = vmatpush.msra.mxu0 %v248
        %275 = vmatpush.msra.mxu0 %v247
        %276 = vmatmul.f32.gmra.mxu0 %v255
        %v277 = vpop.f32.mrf.mxu0
        %v278 = vadd.f32 %v251, %v277
        %279 = vmatmul.f32.gmra.mxu0 %v258
        %v280 = vpop.f32.mrf.mxu0
        %v281 = vadd.f32 %v251, %v280
        %282 = vdwg.mxu0
        %v283 = vmax.f32 %v278, 0.0
        %v284 = vmax.f32 %v281, 0.0
        %v285 = vld [vmem:[%s3] sm:$0xff]
        %v286 = vld [vmem:[%s3 + $0x8] sm:$0xff]
        %v287 = vld [vmem:[%s3 + $0x10] sm:$0xff]
        %v288 = vld [vmem:[%s3 + $0x18] sm:$0xff]
        %v289 = vld [vmem:[%s4] sm:$0x1]
        %v291 = vperm.slane %v289, 0
        %vm293 = vcmask 261120
        %v295 = vsel %vm293, %v283, 0
        %v298 = vsel %vm293, %v284, 0
        %300 = vmatpush.msra.mxu0 0.0
        %301 = vmatpush.msra.mxu0 0.0
        %302 = vmatpush.msra.mxu0 0.0
        %303 = vmatpush.msra.mxu0 0.0
        %304 = vmatpush.msra.mxu0 0.0
        %305 = vmatpush.msra.mxu0 0.0
        %306 = vmatpush.msra.mxu0 0.0
        %307 = vmatpush.msra.mxu0 0.0
        %308 = vmatpush.msra.mxu0 0.0
        %309 = vmatpush.msra.mxu0 0.0
        %310 = vmatpush.msra.mxu0 0.0
        %311 = vmatpush.msra.mxu0 0.0
        %312 = vmatpush.msra.mxu0 %v288
        %313 = vmatpush.msra.mxu0 %v287
        %314 = vmatpush.msra.mxu0 %v286
        %315 = vmatpush.msra.mxu0 %v285
        %316 = vmatmul.f32.gmra.mxu0 %v295
        %v317 = vpop.f32.mrf.mxu0
        %v318 = vadd.f32 %v291, %v317
        %319 = vmatmul.f32.gmra.mxu0 %v298
        %v320 = vpop.f32.mrf.mxu0
        %v321 = vadd.f32 %v291, %v320
        %322 = vdwg.mxu0
        %v323 = vmax.f32 %v318, 0.0
        %v324 = vmax.f32 %v321, 0.0
        %vm325 = vcmask 64512
        %326 = vst.msk [vmem:[%s243] sm:$0xff] %vm325, %v323
        %327 = vst.msk [vmem:[%s243 + $0x8] sm:$0xff] %vm325, %v324
        %s328 = smul.u32 2, %s17
        %p329 = scmp.lt.s32.totalorder %s328, 3
        %s330 = scalar_select %p329, %s328, 3
        %s331 = smul.addr %s330, 8
        %s332 = scalar_lea.vmem %s5, %s331
        // Predicated region
        $region45: #{simple_net_forward.1} parent=39 // pred_check
          %p333 = pneg %p145
        $region46: #{simple_net_forward.1} parent=39 // pred_check_branch
          %335 = sbr.rel (%p333) target = $region48
        $region47: #{simple_net_forward.1} parent=39 // pred_region
          %s336 = smul.u32 2, %s17
        $region48: #{simple_net_forward.1} parent=39 // pred_fallthru
          _
      $region40: #{simple_net_forward.1} parent=5 // pred_fallthru
        _
      %p337 = scmp.le.s32.totalorder 2, %s12
      // Predicated region
      $region49: #{simple_net_forward.1} parent=5 // pred_check
        %p338 = pneg %p337
      $region50: #{simple_net_forward.1} parent=5 // pred_check_branch
        %340 = sbr.rel (%p338) target = $region52
      $region51: #{simple_net_forward.1} parent=5 // pred_region
        %s341 = ssub.s32 %s12, 2
        // Predicated region
        $region53: #{simple_net_forward.1} parent=51 // pred_check
          %p342 = pneg %p151
        $region54: #{simple_net_forward.1} parent=51 // pred_check_branch
          %344 = sbr.rel (%p342) target = $region56
        $region55: #{simple_net_forward.1} parent=51 // pred_region
          %s345 = smul.u32 2, %s18
          %p346 = scmp.lt.s32.totalorder %s345, 3
          %s347 = scalar_select %p346, %s345, 3
          %s348 = smul.addr %s347, 8
          %s349 = scalar_lea.vmem %s5, %s348
        $region56: #{simple_net_forward.1} parent=51 // pred_fallthru
          _
      $region52: #{simple_net_forward.1} parent=5 // pred_fallthru
        _
    $region6: #{simple_net_forward.1} parent=1 // loop_footer
      %s16 = sadd.s32 1, %s12
    $region7: #{simple_net_forward.1} parent=1 // loop_footer_branch
      %11 = sbr.rel target = $region3
    $region8: #{simple_net_forward.1} parent=1 // loop_exit
      _
    %350 = vsyncpa [#allocation3], 1
    %s351 = scalar_lea.sflag [#allocation3], 1
    %352 = vsyncpa %s351, 1

</llo_original>
